<compile_context>
chip_gen: v5e
topology: v5e:2x2
jax: 0.10.0
libtpu: 0.0.40
codegen_flags: <defaults>
</compile_context>

<pallas_src>
import jax
import jax.numpy as jnp
from jax.experimental import pallas as pl
from jax.experimental.pallas import tpu as pltpu


# --------------------------------------------------------------------------
# Math helpers
# --------------------------------------------------------------------------
def _mish_f32(x):
    """mish(x) = x * tanh(softplus(x)), folded to a single exp.

    tanh(softplus(x)) = ((1+e)^2 - 1) / ((1+e)^2 + 1) = (e^2 + 2e) / (e^2 + 2e + 2)
    with e = exp(x).  The x > 20 guard (mish(x) ~= x there) keeps exp from
    overflowing float32.
    """
    e = jnp.exp(jnp.minimum(x, 20.0))
    n = e * e + 2.0 * e
    t = n * pl.reciprocal(n + 2.0, approx=True)
    return jnp.where(x > 20.0, x, x * t)


def _mish_ref(x):
    # Reference mish (matches PyTorch nn.Mish with softplus threshold 20).
    sp = jnp.where(x > 20.0, x, jnp.log1p(jnp.exp(jnp.minimum(x, 20.0))))
    return x * jnp.tanh(sp)


# --------------------------------------------------------------------------
# Kernel
# --------------------------------------------------------------------------
def armynet_kernel(x_ref,
                   w1_ref, b1_ref,
                   w2_ref, b2_ref,
                   w3_ref, b3_ref,
                   w4_ref, b4_ref,
                   o_ref):
    # x and weights are bf16; matmuls accumulate in f32; elementwise in f32.
    x = x_ref[...]

    h = jnp.dot(x, w1_ref[...], preferred_element_type=jnp.float32) + b1_ref[...]
    h = _mish_f32(h).astype(jnp.bfloat16)          # Dropout -> identity (eval)

    h = jnp.dot(h, w2_ref[...], preferred_element_type=jnp.float32) + b2_ref[...]
    h = _mish_f32(h).astype(jnp.bfloat16)          # Dropout -> identity (eval)

    h = jnp.dot(h, w3_ref[...], preferred_element_type=jnp.float32) + b3_ref[...]
    h = _mish_f32(h).astype(jnp.bfloat16)          # Dropout -> identity (eval)

    h = jnp.dot(h, w4_ref[...], preferred_element_type=jnp.float32) + b4_ref[...]
    o_ref[...] = jnp.tanh(h)                       # model[-1] = nn.Tanh()


# --------------------------------------------------------------------------
# Wrapper
# --------------------------------------------------------------------------
def _round_up(n, m):
    return ((n + m - 1) // m) * m


def _pad2(a, rows, cols):
    r, c = a.shape
    return jnp.pad(a, ((0, rows - r), (0, cols - c)))


def armynet_forward(x, params, *, batch_tile=256):
    """x: (B, input_size) float32; params: dict of f32 weights/biases."""
    B, d_in = x.shape
    w1, b1 = params["w1"], params["b1"]
    w2, b2 = params["w2"], params["b2"]
    w3, b3 = params["w3"], params["b3"]
    w4, b4 = params["w4"], params["b4"]
    h1, h2, h3 = w1.shape[1], w2.shape[1], w3.shape[1]
    d_out = w4.shape[1]

    # ---- pad hidden widths to full 128-lane vregs (exact: mish(0)=0) -------
    H1, H2, H3 = _round_up(h1, 128), _round_up(h2, 128), _round_up(h3, 128)
    w1p = _pad2(w1, d_in, H1).astype(jnp.bfloat16)
    w2p = _pad2(w2, H1, H2).astype(jnp.bfloat16)
    w3p = _pad2(w3, H2, H3).astype(jnp.bfloat16)
    w4p = _pad2(w4, H3, d_out).astype(jnp.bfloat16)
    b1p = _pad2(b1, 1, H1).astype(jnp.float32)
    b2p = _pad2(b2, 1, H2).astype(jnp.float32)
    b3p = _pad2(b3, 1, H3).astype(jnp.float32)
    b4p = b4.astype(jnp.float32)

    # ---- batch tiling: big MXU-friendly tile, pad tail, slice afterwards ---
    bt = min(batch_tile, _round_up(B, 8))
    bt = _round_up(bt, 8)
    n_tiles = pl.cdiv(B, bt)
    B_pad = n_tiles * bt
    if B_pad != B:
        x = jnp.pad(x, ((0, B_pad - B), (0, 0)))
    x_bf16 = x.astype(jnp.bfloat16)

    # ---- advisory cost estimate for the XLA scheduler ----------------------
    flops = 2 * B_pad * (d_in * H1 + H1 * H2 + H2 * H3 + H3 * d_out)
    transcendentals = B_pad * (H1 + H2 + H3 + d_out)
    bytes_accessed = (
        B_pad * d_in * 2 + B_pad * d_out * 4
        + 2 * (w1p.size + w2p.size + w3p.size + w4p.size)
        + 4 * (b1p.size + b2p.size + b3p.size + b4p.size))

    # Constant block index => weights/biases stay resident in VMEM.
    rep = lambda shape: pl.BlockSpec(shape, lambda i: (0, 0))

    out = pl.pallas_call(
        armynet_kernel,
        out_shape=jax.ShapeDtypeStruct((B_pad, d_out), jnp.float32),
        grid_spec=pltpu.PrefetchScalarGridSpec(
            num_scalar_prefetch=0,
            grid=(n_tiles,),
            in_specs=[
                pl.BlockSpec((bt, d_in), lambda i: (i, 0)),   # x tile
                rep(w1p.shape), rep(b1p.shape),               # layer 1
                rep(w2p.shape), rep(b2p.shape),               # layer 2
                rep(w3p.shape), rep(b3p.shape),               # layer 3
                rep(w4p.shape), rep(b4p.shape),               # layer 4
            ],
            out_specs=pl.BlockSpec((bt, d_out), lambda i: (i, 0)),
        ),
        compiler_params=pltpu.CompilerParams(
            dimension_semantics=("parallel",)),
        cost_estimate=pl.CostEstimate(
            flops=int(flops),
            transcendentals=int(transcendentals),
            bytes_accessed=int(bytes_accessed)),
    )(x_bf16, w1p, b1p, w2p, b2p, w3p, b3p, w4p, b4p)

    return out[:B]


# --------------------------------------------------------------------------
# Reference & init
# --------------------------------------------------------------------------
def init_params(key, input_size, output_size, size=128):
    """Deterministic synthetic init (Kaiming-uniform-ish scale)."""
    dims = [(input_size, size), (size, size // 2),
            (size // 2, size // 4), (size // 4, output_size)]
    params = {}
    for idx, (fan_in, fan_out) in enumerate(dims, start=1):
        key, kw, kb = jax.random.split(key, 3)
        bound = 1.0 / jnp.sqrt(fan_in)
        params[f"w{idx}"] = jax.random.uniform(
            kw, (fan_in, fan_out), jnp.float32, -bound, bound)
        params[f"b{idx}"] = jax.random.uniform(
            kb, (1, fan_out), jnp.float32, -bound, bound)
    return params


def armynet_reference(x, params):
    """Pure-JAX f32 reference of the same forward pass (eval-mode dropout)."""
    h = x
    for idx in range(1, 4):
        h = _mish_ref(h @ params[f"w{idx}"] + params[f"b{idx}"])
    return jnp.tanh(h @ params["w4"] + params["b4"])


# --------------------------------------------------------------------------
# Self-test
# --------------------------------------------------------------------------
if __name__ == "__main__":
    key = jax.random.PRNGKey(0)
    key, kx, kp, kx2 = jax.random.split(key, 4)

    batch = 8
    input_size = 32
    output_size = 8
    size = 128

    params = init_params(kp, input_size, output_size, size=size)

    # Small batch (tile clamped to batch, grid=1).
    x = jax.random.normal(kx, (batch, input_size), jnp.float32)
    out = jax.block_until_ready(armynet_forward(x, params))
    ref = armynet_reference(x, params)
    assert out.shape == (batch, output_size)
    assert jnp.allclose(out, ref, atol=5e-2), "mismatch vs reference (small batch)"

    # Ragged batch: exercises tail padding + output slicing.
    x2 = jax.random.normal(kx2, (20, input_size), jnp.float32)
    out2 = jax.block_until_ready(armynet_forward(x2, params, batch_tile=16))
    ref2 = armynet_reference(x2, params)
    assert out2.shape == (20, output_size)
    assert jnp.allclose(out2, ref2, atol=5e-2), "mismatch vs reference (ragged batch)"

    print("KERNEL_OK")
</pallas_src>

<mosaic_0001>
module attributes {stable_mosaic.version = 11 : i64} {
  func.func @armynet_kernel(%arg0: i32, %arg1: memref<8x32xbf16, #tpu.memory_space<vmem>>, %arg2: memref<32x128xbf16, #tpu.memory_space<vmem>>, %arg3: memref<1x128xf32, #tpu.memory_space<vmem>>, %arg4: memref<128x128xbf16, #tpu.memory_space<vmem>>, %arg5: memref<1x128xf32, #tpu.memory_space<vmem>>, %arg6: memref<128x128xbf16, #tpu.memory_space<vmem>>, %arg7: memref<1x128xf32, #tpu.memory_space<vmem>>, %arg8: memref<128x8xbf16, #tpu.memory_space<vmem>>, %arg9: memref<1x8xf32, #tpu.memory_space<vmem>>, %arg10: memref<8x8xf32, #tpu.memory_space<vmem>>) attributes {dimension_semantics = [#tpu.dimension_semantics<parallel>], iteration_bounds = array<i64: 1>, scalar_prefetch = 0 : i64, scratch_operands = 0 : i64, tpu.core_type = #tpu.core_type<tc>, window_params = [{transform_indices = @transform_0, window_bounds = array<i64: 8, 32>}, {pipeline_mode = #tpu.pipeline_mode<synchronous>, transform_indices = @transform_1, window_bounds = array<i64: 32, 128>}, {pipeline_mode = #tpu.pipeline_mode<synchronous>, transform_indices = @transform_2, window_bounds = array<i64: 1, 128>}, {pipeline_mode = #tpu.pipeline_mode<synchronous>, transform_indices = @transform_3, window_bounds = array<i64: 128, 128>}, {pipeline_mode = #tpu.pipeline_mode<synchronous>, transform_indices = @transform_4, window_bounds = array<i64: 1, 128>}, {pipeline_mode = #tpu.pipeline_mode<synchronous>, transform_indices = @transform_5, window_bounds = array<i64: 128, 128>}, {pipeline_mode = #tpu.pipeline_mode<synchronous>, transform_indices = @transform_6, window_bounds = array<i64: 1, 128>}, {pipeline_mode = #tpu.pipeline_mode<synchronous>, transform_indices = @transform_7, window_bounds = array<i64: 128, 8>}, {pipeline_mode = #tpu.pipeline_mode<synchronous>, transform_indices = @transform_8, window_bounds = array<i64: 1, 8>}, {transform_indices = @transform_9, window_bounds = array<i64: 8, 8>}]} {
    %c0 = arith.constant 0 : index
    %c0_0 = arith.constant 0 : index
    %0 = vector.load %arg1[%c0, %c0_0] : memref<8x32xbf16, #tpu.memory_space<vmem>>, vector<8x32xbf16>
    %c0_1 = arith.constant 0 : index
    %c0_2 = arith.constant 0 : index
    %1 = vector.load %arg2[%c0_1, %c0_2] : memref<32x128xbf16, #tpu.memory_space<vmem>>, vector<32x128xbf16>
    %cst = arith.constant dense<0.000000e+00> : vector<8x128xf32>
    %2 = tpu.matmul %0, %1, %cst {dimension_numbers = #tpu.dot_dimension_numbers<[1], [0], [0], [1], [0, 0, 1, 1], [], []>} : vector<8x32xbf16>, vector<32x128xbf16>, vector<8x128xf32> -> vector<8x128xf32>
    %c0_3 = arith.constant 0 : index
    %c0_4 = arith.constant 0 : index
    %3 = vector.load %arg3[%c0_3, %c0_4] : memref<1x128xf32, #tpu.memory_space<vmem>>, vector<1x128xf32>
    %4 = vector.broadcast %3 : vector<1x128xf32> to vector<8x128xf32>
    %5 = arith.addf %2, %4 : vector<8x128xf32>
    %cst_5 = arith.constant 2.000000e+01 : f32
    %6 = vector.broadcast %cst_5 : f32 to vector<8x128xf32>
    %7 = arith.minimumf %5, %6 : vector<8x128xf32>
    %8 = math.exp %7 : vector<8x128xf32>
    %9 = arith.mulf %8, %8 : vector<8x128xf32>
    %cst_6 = arith.constant 2.000000e+00 : f32
    %10 = vector.broadcast %cst_6 : f32 to vector<8x128xf32>
    %11 = arith.mulf %10, %8 : vector<8x128xf32>
    %12 = arith.addf %9, %11 : vector<8x128xf32>
    %cst_7 = arith.constant 2.000000e+00 : f32
    %13 = vector.broadcast %cst_7 : f32 to vector<8x128xf32>
    %14 = arith.addf %12, %13 : vector<8x128xf32>
    %15 = tpu.reciprocal %14 {approx = true} : vector<8x128xf32> -> vector<8x128xf32>
    %16 = arith.mulf %12, %15 : vector<8x128xf32>
    %cst_8 = arith.constant 2.000000e+01 : f32
    %17 = vector.broadcast %cst_8 : f32 to vector<8x128xf32>
    %18 = arith.cmpf ogt, %5, %17 : vector<8x128xf32>
    %19 = arith.mulf %5, %16 : vector<8x128xf32>
    %20 = arith.select %18, %5, %19 : vector<8x128xi1>, vector<8x128xf32>
    %21 = arith.truncf %20 : vector<8x128xf32> to vector<8x128xbf16>
    %c0_9 = arith.constant 0 : index
    %c0_10 = arith.constant 0 : index
    %22 = vector.load %arg4[%c0_9, %c0_10] : memref<128x128xbf16, #tpu.memory_space<vmem>>, vector<128x128xbf16>
    %cst_11 = arith.constant dense<0.000000e+00> : vector<8x128xf32>
    %23 = tpu.matmul %21, %22, %cst_11 {dimension_numbers = #tpu.dot_dimension_numbers<[1], [0], [0], [1], [0, 0, 1, 1], [], []>} : vector<8x128xbf16>, vector<128x128xbf16>, vector<8x128xf32> -> vector<8x128xf32>
    %c0_12 = arith.constant 0 : index
    %c0_13 = arith.constant 0 : index
    %24 = vector.load %arg5[%c0_12, %c0_13] : memref<1x128xf32, #tpu.memory_space<vmem>>, vector<1x128xf32>
    %25 = vector.broadcast %24 : vector<1x128xf32> to vector<8x128xf32>
    %26 = arith.addf %23, %25 : vector<8x128xf32>
    %cst_14 = arith.constant 2.000000e+01 : f32
    %27 = vector.broadcast %cst_14 : f32 to vector<8x128xf32>
    %28 = arith.minimumf %26, %27 : vector<8x128xf32>
    %29 = math.exp %28 : vector<8x128xf32>
    %30 = arith.mulf %29, %29 : vector<8x128xf32>
    %cst_15 = arith.constant 2.000000e+00 : f32
    %31 = vector.broadcast %cst_15 : f32 to vector<8x128xf32>
    %32 = arith.mulf %31, %29 : vector<8x128xf32>
    %33 = arith.addf %30, %32 : vector<8x128xf32>
    %cst_16 = arith.constant 2.000000e+00 : f32
    %34 = vector.broadcast %cst_16 : f32 to vector<8x128xf32>
    %35 = arith.addf %33, %34 : vector<8x128xf32>
    %36 = tpu.reciprocal %35 {approx = true} : vector<8x128xf32> -> vector<8x128xf32>
    %37 = arith.mulf %33, %36 : vector<8x128xf32>
    %cst_17 = arith.constant 2.000000e+01 : f32
    %38 = vector.broadcast %cst_17 : f32 to vector<8x128xf32>
    %39 = arith.cmpf ogt, %26, %38 : vector<8x128xf32>
    %40 = arith.mulf %26, %37 : vector<8x128xf32>
    %41 = arith.select %39, %26, %40 : vector<8x128xi1>, vector<8x128xf32>
    %42 = arith.truncf %41 : vector<8x128xf32> to vector<8x128xbf16>
    %c0_18 = arith.constant 0 : index
    %c0_19 = arith.constant 0 : index
    %43 = vector.load %arg6[%c0_18, %c0_19] : memref<128x128xbf16, #tpu.memory_space<vmem>>, vector<128x128xbf16>
    %cst_20 = arith.constant dense<0.000000e+00> : vector<8x128xf32>
    %44 = tpu.matmul %42, %43, %cst_20 {dimension_numbers = #tpu.dot_dimension_numbers<[1], [0], [0], [1], [0, 0, 1, 1], [], []>} : vector<8x128xbf16>, vector<128x128xbf16>, vector<8x128xf32> -> vector<8x128xf32>
    %c0_21 = arith.constant 0 : index
    %c0_22 = arith.constant 0 : index
    %45 = vector.load %arg7[%c0_21, %c0_22] : memref<1x128xf32, #tpu.memory_space<vmem>>, vector<1x128xf32>
    %46 = vector.broadcast %45 : vector<1x128xf32> to vector<8x128xf32>
    %47 = arith.addf %44, %46 : vector<8x128xf32>
    %cst_23 = arith.constant 2.000000e+01 : f32
    %48 = vector.broadcast %cst_23 : f32 to vector<8x128xf32>
    %49 = arith.minimumf %47, %48 : vector<8x128xf32>
    %50 = math.exp %49 : vector<8x128xf32>
    %51 = arith.mulf %50, %50 : vector<8x128xf32>
    %cst_24 = arith.constant 2.000000e+00 : f32
    %52 = vector.broadcast %cst_24 : f32 to vector<8x128xf32>
    %53 = arith.mulf %52, %50 : vector<8x128xf32>
    %54 = arith.addf %51, %53 : vector<8x128xf32>
    %cst_25 = arith.constant 2.000000e+00 : f32
    %55 = vector.broadcast %cst_25 : f32 to vector<8x128xf32>
    %56 = arith.addf %54, %55 : vector<8x128xf32>
    %57 = tpu.reciprocal %56 {approx = true} : vector<8x128xf32> -> vector<8x128xf32>
    %58 = arith.mulf %54, %57 : vector<8x128xf32>
    %cst_26 = arith.constant 2.000000e+01 : f32
    %59 = vector.broadcast %cst_26 : f32 to vector<8x128xf32>
    %60 = arith.cmpf ogt, %47, %59 : vector<8x128xf32>
    %61 = arith.mulf %47, %58 : vector<8x128xf32>
    %62 = arith.select %60, %47, %61 : vector<8x128xi1>, vector<8x128xf32>
    %63 = arith.truncf %62 : vector<8x128xf32> to vector<8x128xbf16>
    %c0_27 = arith.constant 0 : index
    %c0_28 = arith.constant 0 : index
    %64 = vector.load %arg8[%c0_27, %c0_28] : memref<128x8xbf16, #tpu.memory_space<vmem>>, vector<128x8xbf16>
    %cst_29 = arith.constant dense<0.000000e+00> : vector<8x8xf32>
    %65 = tpu.matmul %63, %64, %cst_29 {dimension_numbers = #tpu.dot_dimension_numbers<[1], [0], [0], [1], [0, 0, 1, 1], [], []>} : vector<8x128xbf16>, vector<128x8xbf16>, vector<8x8xf32> -> vector<8x8xf32>
    %c0_30 = arith.constant 0 : index
    %c0_31 = arith.constant 0 : index
    %66 = vector.load %arg9[%c0_30, %c0_31] : memref<1x8xf32, #tpu.memory_space<vmem>>, vector<1x8xf32>
    %67 = vector.broadcast %66 : vector<1x8xf32> to vector<8x8xf32>
    %68 = arith.addf %65, %67 : vector<8x8xf32>
    %69 = math.tanh %68 : vector<8x8xf32>
    %c0_32 = arith.constant 0 : index
    %c0_33 = arith.constant 0 : index
    %70 = vector.load %arg10[%c0_32, %c0_33] : memref<8x8xf32, #tpu.memory_space<vmem>>, vector<8x8xf32>
    tpu.vector_store %arg10[%c0_32, %c0_33], %69 {strides = array<i32>} : memref<8x8xf32, #tpu.memory_space<vmem>>, vector<8x8xf32>,
    return
  }
  func.func @transform_0(%arg0: i32) -> (i32, i32) {
    %c0_i32 = arith.constant 0 : i32
    %c0_i32_0 = arith.constant 0 : i32
    return %arg0, %c0_i32 : i32, i32
  }
  func.func @transform_1(%arg0: i32) -> (i32, i32) {
    %c0_i32 = arith.constant 0 : i32
    %c0_i32_0 = arith.constant 0 : i32
    %c0_i32_1 = arith.constant 0 : i32
    return %c0_i32, %c0_i32_0 : i32, i32
  }
  func.func @transform_2(%arg0: i32) -> (i32, i32) {
    %c0_i32 = arith.constant 0 : i32
    %c0_i32_0 = arith.constant 0 : i32
    %c0_i32_1 = arith.constant 0 : i32
    return %c0_i32, %c0_i32_0 : i32, i32
  }
  func.func @transform_3(%arg0: i32) -> (i32, i32) {
    %c0_i32 = arith.constant 0 : i32
    %c0_i32_0 = arith.constant 0 : i32
    %c0_i32_1 = arith.constant 0 : i32
    return %c0_i32, %c0_i32_0 : i32, i32
  }
  func.func @transform_4(%arg0: i32) -> (i32, i32) {
    %c0_i32 = arith.constant 0 : i32
    %c0_i32_0 = arith.constant 0 : i32
    %c0_i32_1 = arith.constant 0 : i32
    return %c0_i32, %c0_i32_0 : i32, i32
  }
  func.func @transform_5(%arg0: i32) -> (i32, i32) {
    %c0_i32 = arith.constant 0 : i32
    %c0_i32_0 = arith.constant 0 : i32
    %c0_i32_1 = arith.constant 0 : i32
    return %c0_i32, %c0_i32_0 : i32, i32
  }
  func.func @transform_6(%arg0: i32) -> (i32, i32) {
    %c0_i32 = arith.constant 0 : i32
    %c0_i32_0 = arith.constant 0 : i32
    %c0_i32_1 = arith.constant 0 : i32
    return %c0_i32, %c0_i32_0 : i32, i32
  }
  func.func @transform_7(%arg0: i32) -> (i32, i32) {
    %c0_i32 = arith.constant 0 : i32
    %c0_i32_0 = arith.constant 0 : i32
    %c0_i32_1 = arith.constant 0 : i32
    return %c0_i32, %c0_i32_0 : i32, i32
  }
  func.func @transform_8(%arg0: i32) -> (i32, i32) {
    %c0_i32 = arith.constant 0 : i32
    %c0_i32_0 = arith.constant 0 : i32
    %c0_i32_1 = arith.constant 0 : i32
    return %c0_i32, %c0_i32_0 : i32, i32
  }
  func.func @transform_9(%arg0: i32) -> (i32, i32) {
    %c0_i32 = arith.constant 0 : i32
    %c0_i32_0 = arith.constant 0 : i32
    return %arg0, %c0_i32 : i32, i32
  }
}

</mosaic_0001>

<llo_original>
// kernel: tpu_custom_call.1
$region0: #{tpu_custom_call.1}
  #allocation0 [shape = 'u32[]', space=smem, size = 0x4, offset = 0x4, fixed_abs, tag = 'smem constant byte address 0x4 - core index']
  #allocation1 [shape = 'u32[72,128]{1,0:T(1,128)}', space=vmem, size = 0x9000, scoped, tag = 'internal scratch']
  %s0 = inlined_call_operand.vmem [shape: bf16[8,32], index: 0, kind: input, shape index: {}]
  %s1 = inlined_call_operand.hbm [shape: bf16[32,128], index: 1, kind: input, shape index: {}]
  %s2 = inlined_call_operand.vmem [shape: f32[1,128], index: 2, kind: input, shape index: {}]
  %s3 = inlined_call_operand.vmem [shape: bf16[128,128], index: 3, kind: input, shape index: {}]
  %s4 = inlined_call_operand.vmem [shape: f32[1,128], index: 4, kind: input, shape index: {}]
  %s5 = inlined_call_operand.hbm [shape: bf16[128,128], index: 5, kind: input, shape index: {}]
  %s6 = inlined_call_operand.hbm [shape: f32[1,128], index: 6, kind: input, shape index: {}]
  %s7 = inlined_call_operand.vmem [shape: bf16[128,8], index: 7, kind: input, shape index: {}]
  %s8 = inlined_call_operand.vmem [shape: f32[1,8], index: 8, kind: input, shape index: {}]
  %s9 = inlined_call_operand.hbm [shape: f32[8,8], index: 9, kind: output, shape index: {}]
  %s10 = sld [smem:[#allocation0]]
  $region58: #{tpu_custom_call.1} parent=0
    _
  %s12 = ssub.s32 1, %s10
  %s13 = scalar_select 0, %s12, %s10
  $region1: #{tpu_custom_call.1} parent=0
    #allocation2 [shape = 'u8[8192]{0}', space=vmem, size = 0x2000, scoped, tag = 'input window, operand 1, single buffered']
    #allocation3 [shape = 's32[1]{0}', space=sflag, size = 0x4, scoped, tag = 'scoped memory for tpu_custom_call.1']
    #allocation4 [shape = 's32[1]{0}', space=sflag, size = 0x4, scoped, tag = 'scoped memory for tpu_custom_call.1']
    #allocation5 [shape = 'u8[32768]{0}', space=vmem, size = 0x8000, scoped, tag = 'input window, operand 5, single buffered']
    #allocation6 [shape = 's32[1]{0}', space=sflag, size = 0x4, scoped, tag = 'scoped memory for tpu_custom_call.1']
    #allocation7 [shape = 'u8[512]{0}', space=vmem, size = 0x400, scoped, tag = 'input window, operand 6, single buffered']
    #allocation8 [shape = 'u8[4096]{0}', space=vmem, size = 0x1000, scoped, tag = 'output window, operand 0, single buffered']
    %14 = vsyncpa [#allocation3], 0
    %15 = vsyncpa [#allocation6], 0
    %16 = vsyncpa [#allocation4], 0
    // Predicated region
    $region2: #{tpu_custom_call.1} parent=1 // pred_check
      _
    $region3: #{tpu_custom_call.1} parent=1 // pred_check_branch
      %18 = sbr.rel (0) target = $region5
    $region4: #{tpu_custom_call.1} parent=1 // pred_region
      _
    $region5: #{tpu_custom_call.1} parent=1 // pred_fallthru
      _
    // Predicated region
    $region6: #{tpu_custom_call.1} parent=1 // pred_check
      _
    $region7: #{tpu_custom_call.1} parent=1 // pred_check_branch
      %20 = sbr.rel (0) target = $region9
    $region8: #{tpu_custom_call.1} parent=1 // pred_region
      %22 = vsyncadd [#allocation3], 0
      %s23 = sshll.u32 %s1, 4
      %s24 = int_to_ptr.hbm [resolvable:$true] %s23
      %s25 = sshll.u32 [#allocation2], 4
      %s26 = int_to_ptr.vmem [resolvable:$true] %s25
      %31 = dma.hbm_to_vmem [thread:$0]  %s24, 256, %s26, [#allocation3], 64, 64, 4
    $region9: #{tpu_custom_call.1} parent=1 // pred_fallthru
      _
    // Predicated region
    $region10: #{tpu_custom_call.1} parent=1 // pred_check
      _
    $region11: #{tpu_custom_call.1} parent=1 // pred_check_branch
      %33 = sbr.rel (0) target = $region13
    $region12: #{tpu_custom_call.1} parent=1 // pred_region
      _
    $region13: #{tpu_custom_call.1} parent=1 // pred_fallthru
      _
    // Predicated region
    $region14: #{tpu_custom_call.1} parent=1 // pred_check
      _
    $region15: #{tpu_custom_call.1} parent=1 // pred_check_branch
      %35 = sbr.rel (0) target = $region17
    $region16: #{tpu_custom_call.1} parent=1 // pred_region
      _
    $region17: #{tpu_custom_call.1} parent=1 // pred_fallthru
      _
    // Predicated region
    $region18: #{tpu_custom_call.1} parent=1 // pred_check
      _
    $region19: #{tpu_custom_call.1} parent=1 // pred_check_branch
      %37 = sbr.rel (0) target = $region21
    $region20: #{tpu_custom_call.1} parent=1 // pred_region
      _
    $region21: #{tpu_custom_call.1} parent=1 // pred_fallthru
      _
    // Predicated region
    $region22: #{tpu_custom_call.1} parent=1 // pred_check
      _
    $region23: #{tpu_custom_call.1} parent=1 // pred_check_branch
      %39 = sbr.rel (0) target = $region25
    $region24: #{tpu_custom_call.1} parent=1 // pred_region
      %41 = vsyncadd [#allocation6], 0
      %s42 = sshll.u32 %s5, 4
      %s43 = int_to_ptr.hbm [resolvable:$true] %s42
      %s44 = sshll.u32 [#allocation5], 4
      %s45 = int_to_ptr.vmem [resolvable:$true] %s44
      %50 = dma.hbm_to_vmem [thread:$0]  %s43, 1024, %s45, [#allocation6], 64, 64, 4
    $region25: #{tpu_custom_call.1} parent=1 // pred_fallthru
      _
    // Predicated region
    $region26: #{tpu_custom_call.1} parent=1 // pred_check
      _
    $region27: #{tpu_custom_call.1} parent=1 // pred_check_branch
      %52 = sbr.rel (0) target = $region29
    $region28: #{tpu_custom_call.1} parent=1 // pred_region
      %54 = vsyncadd [#allocation6], 0
      %s56 = sshll.u32 %s6, 4
      %s57 = int_to_ptr.hbm [resolvable:$true] %s56
      %s58 = sshll.u32 [#allocation7], 4
      %s59 = int_to_ptr.vmem [resolvable:$true] %s58
      %61 = dma.hbm_to_vmem [thread:$0]  %s57, 16, %s59, [#allocation6]
    $region29: #{tpu_custom_call.1} parent=1 // pred_fallthru
      _
    // Predicated region
    $region30: #{tpu_custom_call.1} parent=1 // pred_check
      _
    $region31: #{tpu_custom_call.1} parent=1 // pred_check_branch
      %63 = sbr.rel (0) target = $region33
    $region32: #{tpu_custom_call.1} parent=1 // pred_region
      _
    $region33: #{tpu_custom_call.1} parent=1 // pred_fallthru
      _
    // Predicated region
    $region34: #{tpu_custom_call.1} parent=1 // pred_check
      _
    $region35: #{tpu_custom_call.1} parent=1 // pred_check_branch
      %65 = sbr.rel (0) target = $region37
    $region36: #{tpu_custom_call.1} parent=1 // pred_region
      _
    $region37: #{tpu_custom_call.1} parent=1 // pred_fallthru
      _
    // Predicated region
    $region38: #{tpu_custom_call.1} parent=1 // pred_check
      _
    $region39: #{tpu_custom_call.1} parent=1 // pred_check_branch
      %67 = sbr.rel (0) target = $region41
    $region40: #{tpu_custom_call.1} parent=1 // pred_region
      %69 = dma.done [#allocation3], 256
    $region41: #{tpu_custom_call.1} parent=1 // pred_fallthru
      _
    // Predicated region
    $region42: #{tpu_custom_call.1} parent=1 // pred_check
      _
    $region43: #{tpu_custom_call.1} parent=1 // pred_check_branch
      %71 = sbr.rel (0) target = $region45
    $region44: #{tpu_custom_call.1} parent=1 // pred_region
      %73 = dma.done [#allocation6], 1024
    $region45: #{tpu_custom_call.1} parent=1 // pred_fallthru
      _
    // Predicated region
    $region46: #{tpu_custom_call.1} parent=1 // pred_check
      _
    $region47: #{tpu_custom_call.1} parent=1 // pred_check_branch
      %75 = sbr.rel (0) target = $region49
    $region48: #{tpu_custom_call.1} parent=1 // pred_region
      %77 = dma.done [#allocation6], 16
    $region49: #{tpu_custom_call.1} parent=1 // pred_fallthru
      _
    %v79 = vld [vmem:[%s0] sm:$0xf]
    %v80 = vld [vmem:[#allocation2] sm:$0xf]
    %v81 = vld [vmem:[#allocation2 + $0x4] sm:$0xf]
    %v82 = vld [vmem:[#allocation2 + $0x8] sm:$0xf]
    %v83 = vld [vmem:[#allocation2 + $0xc] sm:$0xf]
    %v84 = vld [vmem:[%s2] sm:$0x1]
    %v86 = vperm.slane %v84, 0
    %v92 = vunpack.c.l.b16 %v80
    %v93 = vunpack.c.l.b16 %v81
    %v94 = vunpack.c.l.b16 %v82
    %v95 = vunpack.c.l.b16 %v83
    %v96 = vpack.c.b16 %v93, %v92
    %v97 = vpack.c.b16 %v95, %v94
    %vm100 = vcmask 261120
    %v102 = vsel %vm100, %v79, 0
    %104 = vmatpush.bf16.msra.mxu0 0
    %105 = vmatpush.bf16.msra.mxu0 0
    %106 = vmatpush.bf16.msra.mxu0 0
    %107 = vmatpush.bf16.msra.mxu0 0
    %108 = vmatpush.bf16.msra.mxu0 0
    %109 = vmatpush.bf16.msra.mxu0 0
    %110 = vmatpush.bf16.msra.mxu0 %v97
    %111 = vmatpush.bf16.msra.mxu0 %v96
    %112 = vmatmul.bf16.gmra.mxu0 %v102
    %v113 = vpop.f32.mrf.mxu0
    %v114 = vadd.f32 %v86, %v113
    %v115 = vpop.f32.mrf.mxu0
    %116 = vdwg.mxu0
    %v117 = vmin.f32 %v114, 20.0
    %v118 = vmul.f32 %v117, 1.442695
    %v119 = vpow.pop %v118
    %v120 = vmul.f32 %v119, %v119
    %v121 = vmul.f32 %v119, 2.0
    %v122 = vadd.f32 %v120, %v121
    %v123 = vadd.f32 %v122, 2.0
    %v124 = vrcp.pop %v123
    %v125 = vmul.f32 %v122, %v124
    %vm126 = vcmp.gt.f32.partialorder %v114, 20.0
    %v127 = vmul.f32 %v114, %v125
    %v128 = vsel %vm126, %v114, %v127
    %v129 = vpack.c.bf16 %v128, %v128
    %v130 = vld [vmem:[%s3] sm:$0xf]
    %v131 = vld [vmem:[%s3 + $0x4] sm:$0xf]
    %v132 = vld [vmem:[%s3 + $0x8] sm:$0xf]
    %v133 = vld [vmem:[%s3 + $0xc] sm:$0xf]
    %v134 = vld [vmem:[%s3 + $0x10] sm:$0xf]
    %v135 = vld [vmem:[%s3 + $0x14] sm:$0xf]
    %v136 = vld [vmem:[%s3 + $0x18] sm:$0xf]
    %v137 = vld [vmem:[%s3 + $0x1c] sm:$0xf]
    %v138 = vld [vmem:[%s3 + $0x20] sm:$0xf]
    %v139 = vld [vmem:[%s3 + $0x24] sm:$0xf]
    %v140 = vld [vmem:[%s3 + $0x28] sm:$0xf]
    %v141 = vld [vmem:[%s3 + $0x2c] sm:$0xf]
    %v142 = vld [vmem:[%s3 + $0x30] sm:$0xf]
    %v143 = vld [vmem:[%s3 + $0x34] sm:$0xf]
    %v144 = vld [vmem:[%s3 + $0x38] sm:$0xf]
    %v145 = vld [vmem:[%s3 + $0x3c] sm:$0xf]
    %v146 = vld [vmem:[%s4] sm:$0x1]
    %v148 = vperm.slane %v146, 0
    %v166 = vunpack.c.l.b16 %v130
    %v167 = vunpack.c.l.b16 %v131
    %v168 = vunpack.c.l.b16 %v132
    %v169 = vunpack.c.l.b16 %v133
    %v170 = vunpack.c.l.b16 %v134
    %v171 = vunpack.c.l.b16 %v135
    %v172 = vunpack.c.l.b16 %v136
    %v173 = vunpack.c.l.b16 %v137
    %v174 = vunpack.c.l.b16 %v138
    %v175 = vunpack.c.l.b16 %v139
    %v176 = vunpack.c.l.b16 %v140
    %v177 = vunpack.c.l.b16 %v141
    %v178 = vunpack.c.l.b16 %v142
    %v179 = vunpack.c.l.b16 %v143
    %v180 = vunpack.c.l.b16 %v144
    %v181 = vunpack.c.l.b16 %v145
    %v182 = vpack.c.b16 %v167, %v166
    %v183 = vpack.c.b16 %v169, %v168
    %v184 = vpack.c.b16 %v171, %v170
    %v185 = vpack.c.b16 %v173, %v172
    %v186 = vpack.c.b16 %v175, %v174
    %v187 = vpack.c.b16 %v177, %v176
    %v188 = vpack.c.b16 %v179, %v178
    %v189 = vpack.c.b16 %v181, %v180
    %198 = vmatpush.bf16.msra.mxu0 %v189
    %199 = vmatpush.bf16.msra.mxu0 %v188
    %200 = vmatpush.bf16.msra.mxu0 %v187
    %201 = vmatpush.bf16.msra.mxu0 %v186
    %202 = vmatpush.bf16.msra.mxu0 %v185
    %203 = vmatpush.bf16.msra.mxu0 %v184
    %204 = vmatpush.bf16.msra.mxu0 %v183
    %205 = vmatpush.bf16.msra.mxu0 %v182
    %206 = vmatmul.bf16.gmra.mxu0 %v129
    %v207 = vpop.f32.mrf.mxu0
    %v208 = vadd.f32 %v148, %v207
    %v209 = vpop.f32.mrf.mxu0
    %210 = vdwg.mxu0
    %v211 = vmin.f32 %v208, 20.0
    %v212 = vmul.f32 %v211, 1.442695
    %v213 = vpow.pop %v212
    %v214 = vmul.f32 %v213, %v213
    %v215 = vmul.f32 %v213, 2.0
    %v216 = vadd.f32 %v214, %v215
    %v217 = vadd.f32 %v216, 2.0
    %v218 = vrcp.pop %v217
    %v219 = vmul.f32 %v216, %v218
    %vm220 = vcmp.gt.f32.partialorder %v208, 20.0
    %v221 = vmul.f32 %v208, %v219
    %v222 = vsel %vm220, %v208, %v221
    %v223 = vpack.c.bf16 %v222, %v222
    %v224 = vld [vmem:[#allocation5] sm:$0xf]
    %v225 = vld [vmem:[#allocation5 + $0x4] sm:$0xf]
    %v226 = vld [vmem:[#allocation5 + $0x8] sm:$0xf]
    %v227 = vld [vmem:[#allocation5 + $0xc] sm:$0xf]
    %v228 = vld [vmem:[#allocation5 + $0x10] sm:$0xf]
    %v229 = vld [vmem:[#allocation5 + $0x14] sm:$0xf]
    %v230 = vld [vmem:[#allocation5 + $0x18] sm:$0xf]
    %v231 = vld [vmem:[#allocation5 + $0x1c] sm:$0xf]
    %v232 = vld [vmem:[#allocation5 + $0x20] sm:$0xf]
    %v233 = vld [vmem:[#allocation5 + $0x24] sm:$0xf]
    %v234 = vld [vmem:[#allocation5 + $0x28] sm:$0xf]
    %v235 = vld [vmem:[#allocation5 + $0x2c] sm:$0xf]
    %v236 = vld [vmem:[#allocation5 + $0x30] sm:$0xf]
    %v237 = vld [vmem:[#allocation5 + $0x34] sm:$0xf]
    %v238 = vld [vmem:[#allocation5 + $0x38] sm:$0xf]
    %v239 = vld [vmem:[#allocation5 + $0x3c] sm:$0xf]
    %v240 = vld [vmem:[#allocation7] sm:$0x1]
    %v242 = vperm.slane %v240, 0
    %v260 = vunpack.c.l.b16 %v224
    %v261 = vunpack.c.l.b16 %v225
    %v262 = vunpack.c.l.b16 %v226
    %v263 = vunpack.c.l.b16 %v227
    %v264 = vunpack.c.l.b16 %v228
    %v265 = vunpack.c.l.b16 %v229
    %v266 = vunpack.c.l.b16 %v230
    %v267 = vunpack.c.l.b16 %v231
    %v268 = vunpack.c.l.b16 %v232
    %v269 = vunpack.c.l.b16 %v233
    %v270 = vunpack.c.l.b16 %v234
    %v271 = vunpack.c.l.b16 %v235
    %v272 = vunpack.c.l.b16 %v236
    %v273 = vunpack.c.l.b16 %v237
    %v274 = vunpack.c.l.b16 %v238
    %v275 = vunpack.c.l.b16 %v239
    %v276 = vpack.c.b16 %v261, %v260
    %v277 = vpack.c.b16 %v263, %v262
    %v278 = vpack.c.b16 %v265, %v264
    %v279 = vpack.c.b16 %v267, %v266
    %v280 = vpack.c.b16 %v269, %v268
    %v281 = vpack.c.b16 %v271, %v270
    %v282 = vpack.c.b16 %v273, %v272
    %v283 = vpack.c.b16 %v275, %v274
    %292 = vmatpush.bf16.msra.mxu0 %v283
    %293 = vmatpush.bf16.msra.mxu0 %v282
    %294 = vmatpush.bf16.msra.mxu0 %v281
    %295 = vmatpush.bf16.msra.mxu0 %v280
    %296 = vmatpush.bf16.msra.mxu0 %v279
    %297 = vmatpush.bf16.msra.mxu0 %v278
    %298 = vmatpush.bf16.msra.mxu0 %v277
    %299 = vmatpush.bf16.msra.mxu0 %v276
    %300 = vmatmul.bf16.gmra.mxu0 %v223
    %v301 = vpop.f32.mrf.mxu0
    %v302 = vadd.f32 %v242, %v301
    %v303 = vpop.f32.mrf.mxu0
    %304 = vdwg.mxu0
    %v305 = vmin.f32 %v302, 20.0
    %v306 = vmul.f32 %v305, 1.442695
    %v307 = vpow.pop %v306
    %v308 = vmul.f32 %v307, %v307
    %v309 = vmul.f32 %v307, 2.0
    %v310 = vadd.f32 %v308, %v309
    %v311 = vadd.f32 %v310, 2.0
    %v312 = vrcp.pop %v311
    %v313 = vmul.f32 %v310, %v312
    %vm314 = vcmp.gt.f32.partialorder %v302, 20.0
    %v315 = vmul.f32 %v302, %v313
    %v316 = vsel %vm314, %v302, %v315
    %v317 = vpack.c.bf16 %v316, %v316
    %v318 = vld [vmem:[%s7] sm:$0xf]
    %v319 = vld [vmem:[%s7 + $0x4] sm:$0xf]
    %v320 = vld [vmem:[%s7 + $0x8] sm:$0xf]
    %v321 = vld [vmem:[%s7 + $0xc] sm:$0xf]
    %v322 = vld [vmem:[%s7 + $0x10] sm:$0xf]
    %v323 = vld [vmem:[%s7 + $0x14] sm:$0xf]
    %v324 = vld [vmem:[%s7 + $0x18] sm:$0xf]
    %v325 = vld [vmem:[%s7 + $0x1c] sm:$0xf]
    %v326 = vld [vmem:[%s7 + $0x20] sm:$0xf]
    %v327 = vld [vmem:[%s7 + $0x24] sm:$0xf]
    %v328 = vld [vmem:[%s7 + $0x28] sm:$0xf]
    %v329 = vld [vmem:[%s7 + $0x2c] sm:$0xf]
    %v330 = vld [vmem:[%s7 + $0x30] sm:$0xf]
    %v331 = vld [vmem:[%s7 + $0x34] sm:$0xf]
    %v332 = vld [vmem:[%s7 + $0x38] sm:$0xf]
    %v333 = vld [vmem:[%s7 + $0x3c] sm:$0xf]
    %v334 = vld [vmem:[%s8] sm:$0x1]
    %v336 = vperm.slane %v334, 0
    %v354 = vunpack.c.l.b16 %v318
    %v355 = vunpack.c.l.b16 %v319
    %v356 = vunpack.c.l.b16 %v320
    %v357 = vunpack.c.l.b16 %v321
    %v358 = vunpack.c.l.b16 %v322
    %v359 = vunpack.c.l.b16 %v323
    %v360 = vunpack.c.l.b16 %v324
    %v361 = vunpack.c.l.b16 %v325
    %v362 = vunpack.c.l.b16 %v326
    %v363 = vunpack.c.l.b16 %v327
    %v364 = vunpack.c.l.b16 %v328
    %v365 = vunpack.c.l.b16 %v329
    %v366 = vunpack.c.l.b16 %v330
    %v367 = vunpack.c.l.b16 %v331
    %v368 = vunpack.c.l.b16 %v332
    %v369 = vunpack.c.l.b16 %v333
    %v370 = vpack.c.b16 %v355, %v354
    %v371 = vpack.c.b16 %v357, %v356
    %v372 = vpack.c.b16 %v359, %v358
    %v373 = vpack.c.b16 %v361, %v360
    %v374 = vpack.c.b16 %v363, %v362
    %v375 = vpack.c.b16 %v365, %v364
    %v376 = vpack.c.b16 %v367, %v366
    %v377 = vpack.c.b16 %v369, %v368
    %386 = vmatpush.bf16.msra.mxu0 %v377
    %387 = vmatpush.bf16.msra.mxu0 %v376
    %388 = vmatpush.bf16.msra.mxu0 %v375
    %389 = vmatpush.bf16.msra.mxu0 %v374
    %390 = vmatpush.bf16.msra.mxu0 %v373
    %391 = vmatpush.bf16.msra.mxu0 %v372
    %392 = vmatpush.bf16.msra.mxu0 %v371
    %393 = vmatpush.bf16.msra.mxu0 %v370
    %394 = vmatmul.bf16.gmra.mxu0 %v317
    %v395 = vpop.f32.mrf.mxu0
    %v396 = vadd.f32 %v336, %v395
    %v397 = vpop.f32.mrf.mxu0
    %398 = vdwg.mxu0
    %v399 = vtanh.pop %v396
    %vm400 = vcmask 64512
    %401 = vst.msk [vmem:[#allocation8] sm:$0xff] %vm400, %v399
    // Predicated region
    $region50: #{tpu_custom_call.1} parent=1 // pred_check
      _
    $region51: #{tpu_custom_call.1} parent=1 // pred_check_branch
      %403 = sbr.rel (0) target = $region53
    $region52: #{tpu_custom_call.1} parent=1 // pred_region
      %405 = vsyncadd [#allocation4], 0
      %s407 = sshll.u32 [#allocation8], 4
      %s408 = int_to_ptr.vmem [resolvable:$true] %s407
      %s409 = sshll.u32 %s9, 4
      %s410 = int_to_ptr.hbm [resolvable:$true] %s409
      %412 = dma.vmem_to_hbm [thread:$0]  %s408, 128, %s410, [#allocation4]
    $region53: #{tpu_custom_call.1} parent=1 // pred_fallthru
      _
    // Predicated region
    $region54: #{tpu_custom_call.1} parent=1 // pred_check
      _
    $region55: #{tpu_custom_call.1} parent=1 // pred_check_branch
      %414 = sbr.rel (0) target = $region57
    $region56: #{tpu_custom_call.1} parent=1 // pred_region
      %416 = dma.done [#allocation4], 128
    $region57: #{tpu_custom_call.1} parent=1 // pred_fallthru
      _
    %417 = vsyncpa [#allocation3], 1
    %418 = vsyncpa [#allocation6], 1
    %419 = vsyncpa [#allocation4], 1

</llo_original>
